<compile_context>
chip_gen: v7x
topology: tpu7x:2x2x1
jax: 0.10.0
libtpu: 0.0.40
codegen_flags: <defaults>
</compile_context>

<pallas_src>
import jax
import jax.numpy as jnp
from jax.experimental import pallas as pl
from jax.experimental.pallas import tpu as pltpu

_LANE = 128
_SUBLANE = 8


def _relu_kernel(x_ref, o_ref):
    # Pure VPU elementwise max over the whole VMEM tile.
    o_ref[...] = jnp.maximum(x_ref[...], jnp.zeros((), dtype=x_ref.dtype))


def _round_up(a: int, b: int) -> int:
    return -(-a // b) * b


def _num_tensorcores() -> int:
    """Best-effort TensorCores-per-chip query (2 on v7x). Falls back to 1."""
    try:
        info = pltpu.get_tpu_info()
        for name in ("num_tensorcores", "tensorcore_count", "num_cores",
                     "cores_per_chip", "tensorcores_per_chip"):
            v = getattr(info, name, None)
            if isinstance(v, int) and v > 0:
                return v
    except Exception:
        pass
    return 1


def relu_pallas(
    x: jax.Array,
    *,
    target_block_bytes: int = 8 * 1024 * 1024,   # ~8 MiB blocks: safe on v5e/v6e/v7x
    min_kernel_bytes: int = 1 * 1024 * 1024,     # below this, plain jnp (XLA-fusable)
    inplace: bool = False,
) -> jax.Array:
    """Applies ReLU elementwise. Any shape/dtype; returns same shape/dtype."""
    orig_shape = x.shape
    dtype = x.dtype
    n = x.size
    if n == 0:
        return x
    itemsize = jnp.dtype(dtype).itemsize

    # Small-tensor fast path: fixed pallas_call overhead dominates and XLA can
    # fuse a tiny ReLU into neighboring ops for free.
    if n * itemsize < min_kernel_bytes:
        return jnp.maximum(x, jnp.zeros((), dtype=dtype))

    # Lane-dense flat view. Common case (n % 128 == 0): a pure bitcast reshape,
    # so no extra HBM traffic around the custom call.
    x_flat = jnp.ravel(x)
    pad = (-n) % _LANE
    if pad:
        # Rare ragged tail (<128 elems). ReLU(0) == 0, so zero-pad is safe.
        x_flat = jnp.pad(x_flat, (0, pad))
    n_eff = n + pad
    rows = n_eff // _LANE

    # Rows per block sized in bytes; multiple of 32 so the same path is valid
    # for f32 / bf16 / int8 sublane packing.
    tile_rows = max(32, (target_block_bytes // (_LANE * itemsize)) // 32 * 32)

    # v7x (2 TensorCores): ensure the "parallel" grid axis has >= num_cores
    # blocks so both cores get work; only applied when the chip actually
    # reports multiple cores, so v5e/v6e keep a minimal grid.
    num_cores = _num_tensorcores()
    if num_cores >= 2 and rows >= num_cores * 32:
        tile_rows = min(tile_rows, _round_up(pl.cdiv(rows, num_cores), 32))

    if tile_rows >= rows:
        tile_rows = rows  # block == full dim -> always a legal block shape
    block_bytes = tile_rows * _LANE * itemsize

    # Ragged last block handled by Pallas with masked stores; no whole-block pad.
    grid = (pl.cdiv(rows, tile_rows),)

    # (in + out) x 2 pipeline buffers = 4 x block, plus headroom.  Clears v5e's
    # 16 MiB scoped default; stays under v7x's 64 MiB physical VMEM.
    vmem_limit = min(max(4 * block_bytes + (2 << 20), 8 << 20), 60 << 20)

    kwargs = {}
    if inplace:
        # Mirrors torch.nn.ReLU(inplace=True); a real HBM saving only when the
        # flat view is a bitcast (n % 128 == 0) and the caller donates x.
        kwargs["input_output_aliases"] = {0: 0}

    out2d = pl.pallas_call(
        _relu_kernel,
        out_shape=jax.ShapeDtypeStruct((rows, _LANE), dtype),
        grid_spec=pltpu.PrefetchScalarGridSpec(
            num_scalar_prefetch=0,
            grid=grid,
            in_specs=[pl.BlockSpec((tile_rows, _LANE), lambda i: (i, 0))],
            out_specs=pl.BlockSpec((tile_rows, _LANE), lambda i: (i, 0)),
        ),
        compiler_params=pltpu.CompilerParams(
            dimension_semantics=("parallel",),
            vmem_limit_bytes=int(vmem_limit),
        ),
        cost_estimate=pl.CostEstimate(
            flops=n_eff,
            transcendentals=0,
            bytes_accessed=2 * n_eff * itemsize,
        ),
        **kwargs,
    )(x_flat.reshape(rows, _LANE))

    out_flat = out2d.reshape(-1)
    if pad:
        out_flat = out_flat[:n]
    return out_flat.reshape(orig_shape)


if __name__ == "__main__":
    key = jax.random.PRNGKey(0)
    # Small NCHW input consistent with a ResNet feature map.
    x = jax.random.normal(key, (2, 4, 16, 16), dtype=jnp.float32)
    y_ref = jnp.maximum(x, 0.0)

    # Default path: small tensor -> fused jnp fallback (no kernel launch).
    y_fast = jax.block_until_ready(relu_pallas(x))
    assert y_fast.shape == x.shape and y_fast.dtype == x.dtype
    assert bool(jnp.all(y_fast == y_ref))

    # Force the Pallas kernel on the same input (128-aligned, zero-copy view).
    y = jax.block_until_ready(relu_pallas(x, min_kernel_bytes=0))
    assert y.shape == x.shape and y.dtype == x.dtype
    assert bool(jnp.all(y == y_ref))

    # Non-aligned size exercising the <128-elem tail pad path and a
    # multi-block grid with a ragged (masked) last block.
    x2 = jax.random.normal(jax.random.PRNGKey(0), (40, 129), dtype=jnp.float32)
    y2 = jax.block_until_ready(
        relu_pallas(x2, min_kernel_bytes=0,
                    target_block_bytes=32 * _LANE * 4)  # tiny blocks -> grid > 1
    )
    assert bool(jnp.all(y2 == jnp.maximum(x2, 0.0)))

    print("KERNEL_OK")
</pallas_src>

<mosaic_0001>
module attributes {stable_mosaic.version = 11 : i64} {
  func.func @_relu_kernel(%arg0: i32, %arg1: memref<16x128xf32, #tpu.memory_space<vmem>>, %arg2: memref<16x128xf32, #tpu.memory_space<vmem>>) attributes {dimension_semantics = [#tpu.dimension_semantics<parallel>], iteration_bounds = array<i64: 1>, scalar_prefetch = 0 : i64, scratch_operands = 0 : i64, tpu.core_type = #tpu.core_type<tc>, window_params = [{transform_indices = @transform_0, window_bounds = array<i64: 16, 128>}, {transform_indices = @transform_1, window_bounds = array<i64: 16, 128>}]} {
    %c0 = arith.constant 0 : index
    %c0_0 = arith.constant 0 : index
    %0 = vector.load %arg1[%c0, %c0_0] : memref<16x128xf32, #tpu.memory_space<vmem>>, vector<16x128xf32>
    %cst = arith.constant 0.000000e+00 : f32
    %1 = vector.broadcast %cst : f32 to vector<16x128xf32>
    %2 = arith.maximumf %0, %1 : vector<16x128xf32>
    %c0_1 = arith.constant 0 : index
    %c0_2 = arith.constant 0 : index
    %3 = vector.load %arg2[%c0_1, %c0_2] : memref<16x128xf32, #tpu.memory_space<vmem>>, vector<16x128xf32>
    tpu.vector_store %arg2[%c0_1, %c0_2], %2 {strides = array<i32>} : memref<16x128xf32, #tpu.memory_space<vmem>>, vector<16x128xf32>,
    return
  }
  func.func @transform_0(%arg0: i32) -> (i32, i32) {
    %c0_i32 = arith.constant 0 : i32
    %c0_i32_0 = arith.constant 0 : i32
    return %arg0, %c0_i32 : i32, i32
  }
  func.func @transform_1(%arg0: i32) -> (i32, i32) {
    %c0_i32 = arith.constant 0 : i32
    %c0_i32_0 = arith.constant 0 : i32
    return %arg0, %c0_i32 : i32, i32
  }
}

</mosaic_0001>

<llo_original>
// kernel: tpu_custom_call.1
$region0: #{tpu_custom_call.1}
  #allocation0 [shape = 'u32[]', space=smem, size = 0x4, offset = 0x4, fixed_abs, tag = 'smem constant byte address 0x4 - core index']
  #allocation1 [shape = 'u32[144,128]{1,0:T(1,128)}', space=vmem, size = 0x12000, scoped, tag = 'internal scratch']
  %s0 = inlined_call_operand.hbm [shape: f32[16,128], index: 0, kind: input, shape index: {}]
  %s1 = inlined_call_operand.hbm [shape: f32[16,128], index: 1, kind: output, shape index: {}]
  %s2 = sld [smem:[#allocation0]]
  $region18: #{tpu_custom_call.1} parent=0
    _
  %s4 = ssub.s32 1, %s2
  %s5 = scalar_select 0, %s4, %s2
  $region1: #{tpu_custom_call.1} parent=0
    #allocation2 [shape = 'u8[8192]{0}', space=vmem, size = 0x2000, scoped, tag = 'input window, operand 0, single buffered']
    #allocation3 [shape = 's32[1]{0}', space=sflag, size = 0x4, scoped, tag = 'scoped memory for tpu_custom_call.1']
    #allocation4 [shape = 's32[1]{0}', space=sflag, size = 0x4, scoped, tag = 'scoped memory for tpu_custom_call.1']
    #allocation5 [shape = 'u8[8192]{0}', space=vmem, size = 0x2000, scoped, tag = 'output window, operand 0, single buffered']
    %6 = vsyncpa [#allocation3], 0
    %7 = vsyncpa [#allocation4], 0
    // Predicated region
    $region2: #{tpu_custom_call.1} parent=1 // pred_check
      _
    $region3: #{tpu_custom_call.1} parent=1 // pred_check_branch
      %9 = sbr.rel (0) target = $region5
    $region4: #{tpu_custom_call.1} parent=1 // pred_region
      %s11 = ssub.s32 256, 256
      %12 = vsyncadd [#allocation3], %s11
      %s13 = sshll.u32 [#allocation2], 4
      %s14 = int_to_ptr.vmem [resolvable:$true] %s13
      %19 = dma.hbm_to_vmem [thread:$0]  %s0, 256, %s14, [#allocation3], 128, 128, 8
    $region5: #{tpu_custom_call.1} parent=1 // pred_fallthru
      _
    // Predicated region
    $region6: #{tpu_custom_call.1} parent=1 // pred_check
      _
    $region7: #{tpu_custom_call.1} parent=1 // pred_check_branch
      %21 = sbr.rel (0) target = $region9
    $region8: #{tpu_custom_call.1} parent=1 // pred_region
      %22 = dma.done [#allocation3], 256
    $region9: #{tpu_custom_call.1} parent=1 // pred_fallthru
      _
    %v23 = vld [vmem:[#allocation2] sm:$0xff]
    %v24 = vld [vmem:[#allocation2 + $0x8] sm:$0xff]
    %v25 = vmax.f32 %v23, 0.0
    %v26 = vmax.f32 %v24, 0.0
    %27 = vst [vmem:[#allocation5] sm:$0xff] %v25
    %28 = vst [vmem:[#allocation5 + $0x8] sm:$0xff] %v26
    // Predicated region
    $region10: #{tpu_custom_call.1} parent=1 // pred_check
      _
    $region11: #{tpu_custom_call.1} parent=1 // pred_check_branch
      %30 = sbr.rel (0) target = $region13
    $region12: #{tpu_custom_call.1} parent=1 // pred_region
      %s32 = ssub.s32 256, 256
      %33 = vsyncadd [#allocation4], %s32
      %s34 = sshll.u32 [#allocation5], 4
      %s35 = int_to_ptr.vmem [resolvable:$true] %s34
      %40 = dma.vmem_to_hbm [thread:$0]  %s35, 256, %s1, [#allocation4], 128, 128, 8
    $region13: #{tpu_custom_call.1} parent=1 // pred_fallthru
      _
    // Predicated region
    $region14: #{tpu_custom_call.1} parent=1 // pred_check
      _
    $region15: #{tpu_custom_call.1} parent=1 // pred_check_branch
      %42 = sbr.rel (0) target = $region17
    $region16: #{tpu_custom_call.1} parent=1 // pred_region
      %43 = dma.done [#allocation4], 256
    $region17: #{tpu_custom_call.1} parent=1 // pred_fallthru
      _
    %44 = vsyncpa [#allocation3], 1
    %45 = vsyncpa [#allocation4], 1

</llo_original>
